<compile_context>
chip_gen: v7x
topology: tpu7x:2x2x1
jax: 0.10.0
libtpu: 0.0.40
codegen_flags: <defaults>
</compile_context>

<pallas_src>
import functools
from math import sqrt

import jax
import jax.numpy as jnp
from jax import lax
from jax.experimental import pallas as pl
from jax.experimental.pallas import tpu as pltpu


# ---------------------------------------------------------------------------
# Hoisted projection: lane-dense Pallas linear kernel  y = x @ w + b
# ---------------------------------------------------------------------------
def _linear_kernel(x_ref, w_ref, b_ref, o_ref):
    o_ref[...] = (jnp.dot(x_ref[...], w_ref[...],
                          preferred_element_type=jnp.float32)
                  + b_ref[...]).astype(o_ref.dtype)


def _pick_tile(n, cap=512):
    """Largest candidate tile <= cap dividing n; full extent otherwise."""
    for t in sorted({c for c in (1024, 512, 256, 128, 64, 32, 16, 8) if c <= cap},
                    reverse=True):
        if t <= n and n % t == 0:
            return t
    return n


def linear_pallas(x2d, w, b, *, out_dtype=None):
    N, M = x2d.shape
    Mw, F = w.shape
    assert Mw == M
    out_dtype = out_dtype or x2d.dtype
    tn = _pick_tile(N)
    tf = _pick_tile(F)
    grid = (N // tn, F // tf)
    return pl.pallas_call(
        _linear_kernel,
        out_shape=jax.ShapeDtypeStruct((N, F), out_dtype),
        grid_spec=pltpu.PrefetchScalarGridSpec(
            num_scalar_prefetch=0,
            grid=grid,
            in_specs=[
                pl.BlockSpec((tn, M), lambda i, j: (i, 0)),
                pl.BlockSpec((M, tf), lambda i, j: (0, j)),
                pl.BlockSpec((1, tf), lambda i, j: (0, j)),
            ],
            out_specs=pl.BlockSpec((tn, tf), lambda i, j: (i, j)),
        ),
        compiler_params=pltpu.CompilerParams(
            dimension_semantics=("parallel", "parallel")),
    )(x2d, w, b.reshape(1, F))


# ---------------------------------------------------------------------------
# Attention kernel: one grid step = (batch b, query tile qi, head group hg)
# ---------------------------------------------------------------------------
def _attention_kernel(q_ref, k_ref, v_ref, wo_ref, bo_ref, o_ref, acc_ref):
    """Shapes inside the kernel:
      q_ref: (1, g, tq, E)   k_ref: (1, g, S, E)   v_ref: (1, g, S, D)
      wo_ref: (g, D, M)      bo_ref: (1, M)
      o_ref: (1, tq, M)      acc_ref (scratch): (tq, M) f32
    The softmax scale is already folded into Q (via the projection weights).
    """
    hg = pl.program_id(2)

    @pl.when(hg == 0)
    def _init():
        acc_ref[...] = jnp.zeros_like(acc_ref)

    q = q_ref[0]   # (g, tq, E)
    k = k_ref[0]   # (g, S, E)
    v = v_ref[0]   # (g, S, D)

    # Batched scores over the head group; contract E on the last axes so the
    # MXU consumes K directly (no XLU transpose).
    s = jnp.einsum('gqe,gke->gqk', q, k,
                   preferred_element_type=jnp.float32)          # (g, tq, S)
    s = s - jnp.max(s, axis=-1, keepdims=True)
    p = jnp.exp(s)
    l = jnp.sum(p, axis=-1, keepdims=True)
    # EUP approximate reciprocal + one Newton step (two VPU mults) -> ~f32
    # accuracy while keeping the divide off the VALU.
    r = pl.reciprocal(l, approx=True)
    r = r * (2.0 - l * r)
    p = (p * r).astype(v.dtype)

    oh = jnp.einsum('gqk,gkd->gqd', p, v,
                    preferred_element_type=jnp.float32)         # (g, tq, D)

    # Fused output projection, accumulated over heads in this group.
    g = oh.shape[0]
    acc = acc_ref[...]
    for i in range(g):   # static, small unrolled loop over the head group
        acc = acc + jnp.dot(oh[i].astype(wo_ref.dtype), wo_ref[i],
                            preferred_element_type=jnp.float32)
    acc_ref[...] = acc

    @pl.when(hg == pl.num_programs(2) - 1)
    def _finalize():
        o_ref[0] = (acc_ref[...] + bo_ref[...]).astype(o_ref.dtype)


# ---------------------------------------------------------------------------
# VMEM-aware tile / limit selection
# ---------------------------------------------------------------------------
def _lanes(n):
    return ((n + 127) // 128) * 128


def _sublanes(n):
    return ((n + 7) // 8) * 8


def _vmem_capacity_bytes():
    try:
        info = pltpu.get_tpu_info()
        cap = getattr(info, "vmem_capacity_bytes", None)
        if cap:
            return int(cap)
    except Exception:
        pass
    return 64 * 1024 * 1024   # conservative: v7x per-TensorCore VMEM


def _attn_block_bytes(tq, g, S, E, D, M, in_bytes, out_bytes):
    qb = g * _sublanes(tq) * _lanes(E) * in_bytes
    kb = g * _sublanes(S) * _lanes(E) * in_bytes
    vb = g * _sublanes(S) * _lanes(D) * in_bytes
    wob = g * _sublanes(D) * _lanes(M) * in_bytes
    ob = _sublanes(tq) * _lanes(M) * out_bytes
    dbl = 2 * (qb + kb + vb + wob + ob)            # double-buffered blocks
    acc = _sublanes(tq) * _lanes(M) * 4            # persistent f32 accumulator
    tmp = 2 * g * _sublanes(tq) * _lanes(S) * 4    # score + prob f32 temps
    return dbl + acc + tmp


def _pick_tiles(L, S, H, E, D, M, in_bytes, out_bytes, budget):
    """Pick (tq, g): head-group size targeting >=256 output lanes per step
    (already >=128-optimal on v5e), and the largest VMEM-fitting query tile."""
    pref = None
    for d in range(1, H + 1):
        if H % d == 0 and d * E >= 256:
            pref = d
            break
    if pref is None:
        pref = H
    tq_cands = sorted({t for t in (1024, 512, 256, 128, 64, 32, 16, 8)
                       if t <= L and L % t == 0} | {L}, reverse=True)
    for g in [d for d in range(pref, 0, -1) if H % d == 0]:
        for t in tq_cands:
            if _attn_block_bytes(t, g, S, E, D, M, in_bytes, out_bytes) <= budget:
                return t, g
    return tq_cands[-1], 1


# ---------------------------------------------------------------------------
# Wrapper
# ---------------------------------------------------------------------------
def attention_layer(queries, keys, values, params, *, n_heads, compute_dtype=None):
    B, L, M = queries.shape
    _, S, _ = keys.shape
    H = n_heads
    HE = params["wq"].shape[1]
    HD = params["wv"].shape[1]
    E = HE // H
    D = HD // H
    scale = 1.0 / sqrt(E)   # scale=None in the reference -> 1/sqrt(E)
    cdt = jnp.dtype(compute_dtype) if compute_dtype is not None else queries.dtype

    # Fold the softmax scale into the query projection once (zero runtime cost).
    wq = params["wq"] * scale
    bq = params["bq"] * scale

    # Hoisted, lane-dense projection GEMMs (one per input stream).
    q2 = linear_pallas(queries.reshape(B * L, M), wq, bq)
    k2 = linear_pallas(keys.reshape(B * S, M), params["wk"], params["bk"])
    v2 = linear_pallas(values.reshape(B * S, M), params["wv"], params["bv"])

    # Head-major layout for the attention kernel (one-time XLA reshape/transpose
    # of activations; weights are small constants).
    qh = q2.reshape(B, L, H, E).transpose(0, 2, 1, 3).astype(cdt)   # (B,H,L,E)
    kh = k2.reshape(B, S, H, E).transpose(0, 2, 1, 3).astype(cdt)   # (B,H,S,E)
    vh = v2.reshape(B, S, H, D).transpose(0, 2, 1, 3).astype(cdt)   # (B,H,S,D)
    wo_h = params["wo"].reshape(H, D, M).astype(cdt)                # (H,D,M)
    bo2 = params["bo"].reshape(1, M).astype(jnp.float32)

    in_bytes = jnp.dtype(cdt).itemsize
    out_bytes = jnp.dtype(queries.dtype).itemsize
    cap = _vmem_capacity_bytes()
    budget = int(0.45 * cap)
    tq, g = _pick_tiles(L, S, H, E, D, M, in_bytes, out_bytes, budget)
    nq = L // tq
    need = _attn_block_bytes(tq, g, S, E, D, M, in_bytes, out_bytes)
    vmem_limit = int(min(0.9 * cap, max(32 * 1024 * 1024, 1.5 * need)))

    grid = (B, nq, H // g)   # B*nq "parallel" steps feed v7x's two TCs
    out = pl.pallas_call(
        _attention_kernel,
        out_shape=jax.ShapeDtypeStruct((B, L, M), queries.dtype),
        grid_spec=pltpu.PrefetchScalarGridSpec(
            num_scalar_prefetch=0,
            grid=grid,
            in_specs=[
                pl.BlockSpec((1, g, tq, E), lambda b, qi, hg: (b, hg, qi, 0)),  # Q
                pl.BlockSpec((1, g, S, E), lambda b, qi, hg: (b, hg, 0, 0)),    # K
                pl.BlockSpec((1, g, S, D), lambda b, qi, hg: (b, hg, 0, 0)),    # V
                pl.BlockSpec((g, D, M), lambda b, qi, hg: (hg, 0, 0)),          # Wo
                pl.BlockSpec((1, M), lambda b, qi, hg: (0, 0)),                 # bo
            ],
            out_specs=pl.BlockSpec((1, tq, M), lambda b, qi, hg: (b, qi, 0)),
            scratch_shapes=[pltpu.VMEM((tq, M), jnp.float32)],
        ),
        compiler_params=pltpu.CompilerParams(
            dimension_semantics=("parallel", "parallel", "arbitrary"),
            vmem_limit_bytes=vmem_limit,
        ),
    )(qh, kh, vh, wo_h, bo2)
    return out


# ---------------------------------------------------------------------------
# Params + pure-JAX reference
# ---------------------------------------------------------------------------
def init_params(key, d_model, n_heads, d_keys=None, d_values=None,
                dtype=jnp.float32):
    """PyTorch-Linear-style init (uniform +-1/sqrt(fan_in)); weights stored
    pre-transposed as (in_features, out_features)."""
    d_keys = d_keys or d_model // n_heads
    d_values = d_values or d_model // n_heads
    ks = jax.random.split(key, 8)

    def linear(kw, kb, fan_in, fan_out):
        bound = 1.0 / sqrt(fan_in)
        w = jax.random.uniform(kw, (fan_in, fan_out), dtype, -bound, bound)
        b = jax.random.uniform(kb, (fan_out,), dtype, -bound, bound)
        return w, b

    wq, bq = linear(ks[0], ks[1], d_model, d_keys * n_heads)
    wk, bk = linear(ks[2], ks[3], d_model, d_keys * n_heads)
    wv, bv = linear(ks[4], ks[5], d_model, d_values * n_heads)
    wo, bo = linear(ks[6], ks[7], d_values * n_heads, d_model)
    return dict(wq=wq, bq=bq, wk=wk, bk=bk, wv=wv, bv=bv, wo=wo, bo=bo)


def reference_attention_layer(queries, keys, values, params, *, n_heads):
    """Pure-JAX reference matching the PyTorch forward exactly (eval mode)."""
    B, L, d_model = queries.shape
    _, S, _ = keys.shape
    H = n_heads
    Q = (queries @ params["wq"] + params["bq"]).reshape(B, L, H, -1)
    K = (keys @ params["wk"] + params["bk"]).reshape(B, S, H, -1)
    V = (values @ params["wv"] + params["bv"]).reshape(B, S, H, -1)
    E = Q.shape[-1]
    scale = 1.0 / sqrt(E)
    scores = jnp.einsum("blhe,bshe->bhls", Q, K)
    A = jax.nn.softmax(scale * scores, axis=-1)
    out = jnp.einsum("bhls,bshd->blhd", A, V).reshape(B, L, -1)
    return out @ params["wo"] + params["bo"]


if __name__ == "__main__":
    # Small, consistent shapes: B=2, L=S=8 (seq), d_model=32, n_heads=4 (E=D=8).
    B, L, S, d_model, n_heads = 2, 8, 8, 32, 4

    key = jax.random.PRNGKey(0)
    k_q, k_k, k_v, k_p = jax.random.split(key, 4)

    queries = jax.random.normal(k_q, (B, L, d_model), jnp.float32)
    keys = jax.random.normal(k_k, (B, S, d_model), jnp.float32)
    values = jax.random.normal(k_v, (B, S, d_model), jnp.float32)

    params = init_params(k_p, d_model, n_heads)

    # f32 path — tight tolerance (Newton-refined reciprocal restores accuracy).
    out = attention_layer(queries, keys, values, params, n_heads=n_heads)
    out = jax.block_until_ready(out)
    ref = reference_attention_layer(queries, keys, values, params, n_heads=n_heads)
    assert out.shape == (B, L, d_model)
    assert jnp.allclose(out, ref, atol=1e-5, rtol=1e-5), "f32 path mismatch vs reference"

    # bf16 operand path (v6e/v7x MXU throughput, halved K/V footprint); f32
    # softmax stats and accumulator — loose tolerance reflects bf16 operands.
    out_bf16 = attention_layer(queries, keys, values, params, n_heads=n_heads,
                               compute_dtype=jnp.bfloat16)
    out_bf16 = jax.block_until_ready(out_bf16)
    assert jnp.allclose(out_bf16, ref, atol=5e-2, rtol=5e-2), "bf16 path mismatch vs reference"

    print("KERNEL_OK")
</pallas_src>

<mosaic_0001>
module attributes {stable_mosaic.version = 11 : i64} {
  func.func @_linear_kernel(%arg0: i32, %arg1: i32, %arg2: memref<16x32xf32, #tpu.memory_space<vmem>>, %arg3: memref<32x32xf32, #tpu.memory_space<vmem>>, %arg4: memref<1x32xf32, #tpu.memory_space<vmem>>, %arg5: memref<16x32xf32, #tpu.memory_space<vmem>>) attributes {dimension_semantics = [#tpu.dimension_semantics<parallel>, #tpu.dimension_semantics<parallel>], iteration_bounds = array<i64: 1, 1>, scalar_prefetch = 0 : i64, scratch_operands = 0 : i64, tpu.core_type = #tpu.core_type<tc>, window_params = [{transform_indices = @transform_0, window_bounds = array<i64: 16, 32>}, {transform_indices = @transform_1, window_bounds = array<i64: 32, 32>}, {transform_indices = @transform_2, window_bounds = array<i64: 1, 32>}, {transform_indices = @transform_3, window_bounds = array<i64: 16, 32>}]} {
    %c0 = arith.constant 0 : index
    %c0_0 = arith.constant 0 : index
    %0 = vector.load %arg2[%c0, %c0_0] : memref<16x32xf32, #tpu.memory_space<vmem>>, vector<16x32xf32>
    %c0_1 = arith.constant 0 : index
    %c0_2 = arith.constant 0 : index
    %1 = vector.load %arg3[%c0_1, %c0_2] : memref<32x32xf32, #tpu.memory_space<vmem>>, vector<32x32xf32>
    %cst = arith.constant dense<0.000000e+00> : vector<16x32xf32>
    %2 = tpu.matmul %0, %1, %cst {dimension_numbers = #tpu.dot_dimension_numbers<[1], [0], [0], [1], [0, 0, 1, 1], [], []>} : vector<16x32xf32>, vector<32x32xf32>, vector<16x32xf32> -> vector<16x32xf32>
    %c0_3 = arith.constant 0 : index
    %c0_4 = arith.constant 0 : index
    %3 = vector.load %arg4[%c0_3, %c0_4] : memref<1x32xf32, #tpu.memory_space<vmem>>, vector<1x32xf32>
    %4 = vector.broadcast %3 : vector<1x32xf32> to vector<16x32xf32>
    %5 = arith.addf %2, %4 : vector<16x32xf32>
    %c0_5 = arith.constant 0 : index
    %c0_6 = arith.constant 0 : index
    %6 = vector.load %arg5[%c0_5, %c0_6] : memref<16x32xf32, #tpu.memory_space<vmem>>, vector<16x32xf32>
    tpu.vector_store %arg5[%c0_5, %c0_6], %5 {strides = array<i32>} : memref<16x32xf32, #tpu.memory_space<vmem>>, vector<16x32xf32>,
    return
  }
  func.func @transform_0(%arg0: i32, %arg1: i32) -> (i32, i32) {
    %c0_i32 = arith.constant 0 : i32
    %c0_i32_0 = arith.constant 0 : i32
    return %arg0, %c0_i32 : i32, i32
  }
  func.func @transform_1(%arg0: i32, %arg1: i32) -> (i32, i32) {
    %c0_i32 = arith.constant 0 : i32
    %c0_i32_0 = arith.constant 0 : i32
    return %c0_i32, %arg1 : i32, i32
  }
  func.func @transform_2(%arg0: i32, %arg1: i32) -> (i32, i32) {
    %c0_i32 = arith.constant 0 : i32
    %c0_i32_0 = arith.constant 0 : i32
    return %c0_i32, %arg1 : i32, i32
  }
  func.func @transform_3(%arg0: i32, %arg1: i32) -> (i32, i32) {
    %c0_i32 = arith.constant 0 : i32
    return %arg0, %arg1 : i32, i32
  }
}

</mosaic_0001>

<llo_original>
// kernel: tpu_custom_call.1
$region0: #{tpu_custom_call.1}
  #allocation0 [shape = 'u32[]', space=smem, size = 0x4, offset = 0x4, fixed_abs, tag = 'smem constant byte address 0x4 - core index']
  #allocation1 [shape = 'u32[144,128]{1,0:T(1,128)}', space=vmem, size = 0x12000, scoped, tag = 'internal scratch']
  %s0 = inlined_call_operand.hbm [shape: f32[16,32], index: 0, kind: input, shape index: {}]
  %s1 = inlined_call_operand.hbm [shape: f32[32,32], index: 1, kind: input, shape index: {}]
  %s2 = inlined_call_operand.vmem [shape: f32[1,32], index: 2, kind: input, shape index: {}]
  %s3 = inlined_call_operand.hbm [shape: f32[16,32], index: 3, kind: output, shape index: {}]
  %s4 = sld [smem:[#allocation0]]
  $region30: #{tpu_custom_call.1} parent=0
    _
  %s6 = ssub.s32 1, %s4
  %s7 = scalar_select 0, %s6, %s4
  $region1: #{tpu_custom_call.1} parent=0
    #allocation2 [shape = 'u8[8192]{0}', space=vmem, size = 0x2000, scoped, tag = 'input window, operand 0, single buffered']
    #allocation3 [shape = 's32[1]{0}', space=sflag, size = 0x4, scoped, tag = 'scoped memory for tpu_custom_call.1']
    #allocation4 [shape = 's32[1]{0}', space=sflag, size = 0x4, scoped, tag = 'scoped memory for tpu_custom_call.1']
    #allocation5 [shape = 'u8[16384]{0}', space=vmem, size = 0x4000, scoped, tag = 'input window, operand 1, single buffered']
    #allocation6 [shape = 's32[1]{0}', space=sflag, size = 0x4, scoped, tag = 'scoped memory for tpu_custom_call.1']
    #allocation7 [shape = 'u8[8192]{0}', space=vmem, size = 0x2000, scoped, tag = 'output window, operand 0, single buffered']
    %8 = vsyncpa [#allocation3], 0
    %9 = vsyncpa [#allocation6], 0
    %10 = vsyncpa [#allocation4], 0
    // Predicated region
    $region2: #{tpu_custom_call.1} parent=1 // pred_check
      _
    $region3: #{tpu_custom_call.1} parent=1 // pred_check_branch
      %12 = sbr.rel (0) target = $region5
    $region4: #{tpu_custom_call.1} parent=1 // pred_region
      %s14 = ssub.s32 256, 256
      %15 = vsyncadd [#allocation3], %s14
      %s16 = sshll.u32 [#allocation2], 4
      %s17 = int_to_ptr.vmem [resolvable:$true] %s16
      %22 = dma.hbm_to_vmem [thread:$0]  %s0, 256, %s17, [#allocation3], 128, 128, 8
    $region5: #{tpu_custom_call.1} parent=1 // pred_fallthru
      _
    // Predicated region
    $region6: #{tpu_custom_call.1} parent=1 // pred_check
      _
    $region7: #{tpu_custom_call.1} parent=1 // pred_check_branch
      %24 = sbr.rel (0) target = $region9
    $region8: #{tpu_custom_call.1} parent=1 // pred_region
      %s26 = ssub.s32 512, 512
      %27 = vsyncadd [#allocation6], %s26
      %s28 = sshll.u32 [#allocation5], 4
      %s29 = int_to_ptr.vmem [resolvable:$true] %s28
      %34 = dma.hbm_to_vmem [thread:$0]  %s1, 512, %s29, [#allocation6], 128, 128, 8
    $region9: #{tpu_custom_call.1} parent=1 // pred_fallthru
      _
    // Predicated region
    $region10: #{tpu_custom_call.1} parent=1 // pred_check
      _
    $region11: #{tpu_custom_call.1} parent=1 // pred_check_branch
      %36 = sbr.rel (0) target = $region13
    $region12: #{tpu_custom_call.1} parent=1 // pred_region
      _
    $region13: #{tpu_custom_call.1} parent=1 // pred_fallthru
      _
    // Predicated region
    $region14: #{tpu_custom_call.1} parent=1 // pred_check
      _
    $region15: #{tpu_custom_call.1} parent=1 // pred_check_branch
      %38 = sbr.rel (0) target = $region17
    $region16: #{tpu_custom_call.1} parent=1 // pred_region
      %39 = dma.done [#allocation3], 256
    $region17: #{tpu_custom_call.1} parent=1 // pred_fallthru
      _
    // Predicated region
    $region18: #{tpu_custom_call.1} parent=1 // pred_check
      _
    $region19: #{tpu_custom_call.1} parent=1 // pred_check_branch
      %41 = sbr.rel (0) target = $region21
    $region20: #{tpu_custom_call.1} parent=1 // pred_region
      %42 = dma.done [#allocation6], 512
    $region21: #{tpu_custom_call.1} parent=1 // pred_fallthru
      _
    %v43 = vld [vmem:[#allocation2] sm:$0xff]
    %v44 = vld [vmem:[#allocation2 + $0x8] sm:$0xff]
    %v45 = vld [vmem:[#allocation5] sm:$0xff]
    %v46 = vld [vmem:[#allocation5 + $0x8] sm:$0xff]
    %v47 = vld [vmem:[#allocation5 + $0x10] sm:$0xff]
    %v48 = vld [vmem:[#allocation5 + $0x18] sm:$0xff]
    %v49 = vld [vmem:[%s2] sm:$0x1]
    %v51 = vlaneseq
    %v52 = vshrl.u32 %v51, 7
    %v53 = vsub.s32 0, %v52
    %v54 = vrot.slane %v49, %v53
    %vm56 = vcmask 261120
    %v58 = vsel %vm56, %v43, 0
    %v61 = vsel %vm56, %v44, 0
    %63 = vmatprep.subr.mxu0 0.0
    %64 = vmatpush1.msra.mxu0 %v45
    %65 = vmatprep.subr.mxu0 0.0
    %66 = vmatpush1.msra.mxu0 %v46
    %67 = vmatprep.subr.mxu0 0.0
    %68 = vmatpush1.msra.mxu0 %v47
    %69 = vmatprep.subr.mxu0 0.0
    %70 = vmatpush1.msra.mxu0 %v48
    %71 = vmatprep.subr.mxu0 0.0
    %72 = vmatpush1.msra.mxu0 0.0
    %73 = vmatprep.subr.mxu0 0.0
    %74 = vmatpush1.msra.mxu0 0.0
    %75 = vmatprep.subr.mxu0 0.0
    %76 = vmatpush1.msra.mxu0 0.0
    %77 = vmatprep.subr.mxu0 0.0
    %78 = vmatpush1.msra.mxu0 0.0
    %79 = vmatprep.subr.mxu0 0.0
    %80 = vmatpush1.msra.mxu0 0.0
    %81 = vmatprep.subr.mxu0 0.0
    %82 = vmatpush1.msra.mxu0 0.0
    %83 = vmatprep.subr.mxu0 0.0
    %84 = vmatpush1.msra.mxu0 0.0
    %85 = vmatprep.subr.mxu0 0.0
    %86 = vmatpush1.msra.mxu0 0.0
    %87 = vmatprep.subr.mxu0 0.0
    %88 = vmatpush1.msra.mxu0 0.0
    %89 = vmatprep.subr.mxu0 0.0
    %90 = vmatpush1.msra.mxu0 0.0
    %91 = vmatprep.subr.mxu0 0.0
    %92 = vmatpush1.msra.mxu0 0.0
    %93 = vmatprep.subr.mxu0 0.0
    %94 = vmatpush1.msra.mxu0 0.0
    %95 = vmatprep.subr.mxu0 0.0
    %96 = vmatpush1.msra.mxu0 0.0
    %97 = vmatprep.subr.mxu0 0.0
    %98 = vmatpush1.msra.mxu0 0.0
    %99 = vmatprep.subr.mxu0 0.0
    %100 = vmatpush1.msra.mxu0 0.0
    %101 = vmatprep.subr.mxu0 0.0
    %102 = vmatpush1.msra.mxu0 0.0
    %103 = vmatprep.subr.mxu0 0.0
    %104 = vmatpush1.msra.mxu0 0.0
    %105 = vmatprep.subr.mxu0 0.0
    %106 = vmatpush1.msra.mxu0 0.0
    %107 = vmatprep.subr.mxu0 0.0
    %108 = vmatpush1.msra.mxu0 0.0
    %109 = vmatprep.subr.mxu0 0.0
    %110 = vmatpush1.msra.mxu0 0.0
    %111 = vmatprep.subr.mxu0 0.0
    %112 = vmatpush1.msra.mxu0 0.0
    %113 = vmatprep.subr.mxu0 0.0
    %114 = vmatpush1.msra.mxu0 0.0
    %115 = vmatprep.subr.mxu0 0.0
    %116 = vmatpush1.msra.mxu0 0.0
    %117 = vmatprep.subr.mxu0 0.0
    %118 = vmatpush1.msra.mxu0 0.0
    %119 = vmatprep.subr.mxu0 0.0
    %120 = vmatpush1.msra.mxu0 0.0
    %121 = vmatprep.subr.mxu0 0.0
    %122 = vmatpush1.msra.mxu0 0.0
    %123 = vmatprep.subr.mxu0 0.0
    %124 = vmatpush1.msra.mxu0 0.0
    %125 = vmatprep.subr.mxu0 0.0
    %126 = vmatpush1.msra.mxu0 0.0
    %127 = vmatprep.mubr.f32.mxu0 0.0
    %128 = vmatmul.mubr.f32.gmra.mrb[0].mxu0 %v58
    %v129 = vpop.f32.mrb[0].mxu0
    %v130 = vadd.f32 %v54, %v129
    %v131 = vpop.f32.mrb[0].mxu0
    %132 = vmatprep.mubr.f32.mxu0 0.0
    %133 = vmatmul.mubr.f32.gmra.mrb[0].mxu0 %v61
    %v134 = vpop.f32.mrb[0].mxu0
    %v135 = vadd.f32 %v54, %v134
    %v136 = vpop.f32.mrb[0].mxu0
    %137 = vdwg.mxu0
    %138 = vst.msk [vmem:[#allocation7] sm:$0xff] %vm56, %v130
    %139 = vst.msk [vmem:[#allocation7 + $0x8] sm:$0xff] %vm56, %v135
    // Predicated region
    $region22: #{tpu_custom_call.1} parent=1 // pred_check
      _
    $region23: #{tpu_custom_call.1} parent=1 // pred_check_branch
      %141 = sbr.rel (0) target = $region25
    $region24: #{tpu_custom_call.1} parent=1 // pred_region
      %s143 = ssub.s32 256, 256
      %144 = vsyncadd [#allocation4], %s143
      %s145 = sshll.u32 [#allocation7], 4
      %s146 = int_to_ptr.vmem [resolvable:$true] %s145
      %151 = dma.vmem_to_hbm [thread:$0]  %s146, 256, %s3, [#allocation4], 128, 128, 8
    $region25: #{tpu_custom_call.1} parent=1 // pred_fallthru
      _
    // Predicated region
    $region26: #{tpu_custom_call.1} parent=1 // pred_check
      _
    $region27: #{tpu_custom_call.1} parent=1 // pred_check_branch
      %153 = sbr.rel (0) target = $region29
    $region28: #{tpu_custom_call.1} parent=1 // pred_region
      %154 = dma.done [#allocation4], 256
    $region29: #{tpu_custom_call.1} parent=1 // pred_fallthru
      _
    %155 = vsyncpa [#allocation3], 1
    %156 = vsyncpa [#allocation6], 1
    %157 = vsyncpa [#allocation4], 1

</llo_original>
